<compile_context>
chip_gen: v7x
topology: tpu7x:2x2x1
jax: 0.10.0
libtpu: 0.0.40
codegen_flags: <defaults>
</compile_context>

<pallas_src>
import jax
import jax.numpy as jnp
from jax.experimental import pallas as pl
from jax.experimental.pallas import tpu as pltpu


# ----------------------------------------------------------------------------
# Kernels
# ----------------------------------------------------------------------------
def _q_kernel_rows(x_ref, w1_ref, b1_ref, w2_ref, b2_ref, w3_ref, b3_ref,
                   o_ref):
    """Small-batch path: activations are [tb, 64] (batch on sublanes)."""
    x = x_ref[...]                                        # [tb, 4]

    # Layer 1: packed K=4 matmul (MXU otherwise idle here).
    h1 = jnp.maximum(
        jnp.dot(x, w1_ref[...], preferred_element_type=jnp.float32)
        + b1_ref[...], 0.0)                               # [tb, 64]

    # Layer 2: the only real matmul (64x64), f32 accumulation on the MXU.
    h2 = jnp.maximum(
        jnp.dot(h1, w2_ref[...], preferred_element_type=jnp.float32)
        + b2_ref[...], 0.0)                               # [tb, 64]

    # Layer 3 (N=1): VPU multiply by the [1,64] weight row + XLU lane reduce.
    y = jnp.sum(h2 * w3_ref[...], axis=-1, keepdims=True) + b3_ref[...]  # [tb,1]

    # Tanh on the EUP, scale fused into the store.
    o_ref[...] = jnp.tanh(y) * 500000.0


def _q_kernel_lanes(xt_ref, w1t_ref, b1t_ref, w2t_ref, b2t_ref, w3t_ref,
                    b3_ref, o_ref):
    """Large-batch path: batch in lanes, activations [64, tb], output [1, tb]."""
    xt = xt_ref[...]                                      # [4, tb]

    # Layer 1: [64,4] @ [4,tb] on the MXU (K=4 is free; MXU idle otherwise).
    h1 = jnp.maximum(
        jnp.dot(w1t_ref[...], xt, preferred_element_type=jnp.float32)
        + b1t_ref[...], 0.0)                              # [64, tb]

    # Layer 2: [64,64] @ [64,tb] on the MXU, f32 accumulation.
    h2 = jnp.maximum(
        jnp.dot(w2t_ref[...], h1, preferred_element_type=jnp.float32)
        + b2t_ref[...], 0.0)                              # [64, tb]

    # Layer 3 (N=1): VPU multiply by the [64,1] weight column + XLU sublane
    # reduce -> naturally lane-dense [1, tb] result.
    y = (jnp.sum(h2 * w3t_ref[...], axis=0, keepdims=True)
         + b3_ref[...])                                   # [1, tb]

    o_ref[...] = jnp.tanh(y) * 500000.0                   # lane-dense store


# ----------------------------------------------------------------------------
# Wrapper
# ----------------------------------------------------------------------------
def _choose_lane_tile(B):
    """Lane-tile (multiple of 128) for the batch-in-lanes path."""
    cap = 2048                       # ~1.5 MiB VMEM at tb=2048: never the limit
    if B <= 256:
        return 128                   # grid of 1-2 balanced points
    # Two balanced grid points when possible so ("parallel",) can shard the
    # grid across v7x's two TensorCores; cap the tile for very large B.
    half = -(-B // 2)                # ceil(B/2)
    tb = -(-half // 128) * 128       # round up to a lane-dense multiple of 128
    return min(tb, cap)


def q_controller_forward(state, setpoint, params):
    """forward(state[B,3], setpoint[B,1]) -> [B,1], matching the PyTorch module."""
    state = state.astype(jnp.float32)
    setpoint = setpoint.astype(jnp.float32)
    B = state.shape[0]

    # Packed input: 16 bytes/row of wrapper glue (negligible), lets layer 1 be
    # a single matmul instead of lane-broadcast MACs.
    x = jnp.concatenate([state, setpoint], axis=-1)       # [B, 4]

    if B < 128:
        # ---- small-batch path: rows = batch, single grid point -------------
        return pl.pallas_call(
            _q_kernel_rows,
            out_shape=jax.ShapeDtypeStruct((B, 1), jnp.float32),
            grid=(1,),
            in_specs=[
                pl.BlockSpec((B, 4), lambda i: (0, 0)),    # x
                pl.BlockSpec((4, 64), lambda i: (0, 0)),   # w1
                pl.BlockSpec((1, 64), lambda i: (0, 0)),   # b1
                pl.BlockSpec((64, 64), lambda i: (0, 0)),  # w2
                pl.BlockSpec((1, 64), lambda i: (0, 0)),   # b2
                pl.BlockSpec((1, 64), lambda i: (0, 0)),   # w3 row
                pl.BlockSpec((1, 1), lambda i: (0, 0)),    # b3
            ],
            out_specs=pl.BlockSpec((B, 1), lambda i: (0, 0)),
        )(x, params["w1"], params["b1"], params["w2"], params["b2"],
          params["w3"], params["b3"])

    # ---- large-batch path: batch in lanes, lane-dense output ---------------
    x_t = x.T                                              # [4, B]
    tb = _choose_lane_tile(B)
    grid = (pl.cdiv(B, tb),)

    out_t = pl.pallas_call(
        _q_kernel_lanes,
        out_shape=jax.ShapeDtypeStruct((1, B), jnp.float32),
        grid=grid,
        in_specs=[
            pl.BlockSpec((4, tb), lambda i: (0, i)),       # x_t (batch-tiled)
            pl.BlockSpec((64, 4), lambda i: (0, 0)),       # w1^T  (resident)
            pl.BlockSpec((64, 1), lambda i: (0, 0)),       # b1 col
            pl.BlockSpec((64, 64), lambda i: (0, 0)),      # w2^T
            pl.BlockSpec((64, 1), lambda i: (0, 0)),       # b2 col
            pl.BlockSpec((64, 1), lambda i: (0, 0)),       # w3 col
            pl.BlockSpec((1, 1), lambda i: (0, 0)),        # b3
        ],
        out_specs=pl.BlockSpec((1, tb), lambda i: (0, i)),
        compiler_params=pltpu.CompilerParams(
            dimension_semantics=("parallel",)),
    )(x_t, params["w1t"], params["b1t"], params["w2t"], params["b2t"],
      params["w3t"], params["b3"])

    # Trivial metadata reshape back to the module's [B, 1] output.
    return out_t.reshape(B, 1)


# ----------------------------------------------------------------------------
# Params / reference
# ----------------------------------------------------------------------------
def init_params(key):
    """nn.Linear-default init: U(-1/sqrt(fan_in), +1/sqrt(fan_in)).

    Stores both layouts so no per-call transposes are needed:
      rows-path:   w* as [in, out], b* as [1, out]
      lanes-path:  w*t as [out, in], b*t as [out, 1]
    NOTE: PyTorch nn.Linear stores weights as [out, in]; loading pretrained
    weights requires transposing into the [in, out] convention used here.
    """
    keys = jax.random.split(key, 6)

    def lin(kw, kb, fan_in, fan_out):
        bound = 1.0 / jnp.sqrt(float(fan_in))
        w = jax.random.uniform(kw, (fan_in, fan_out), jnp.float32, -bound, bound)
        b = jax.random.uniform(kb, (1, fan_out), jnp.float32, -bound, bound)
        return w, b

    w1, b1 = lin(keys[0], keys[1], 4, 64)
    w2, b2 = lin(keys[2], keys[3], 64, 64)
    w3_col, b3 = lin(keys[4], keys[5], 64, 1)              # [64,1], [1,1]

    return {
        # rows = batch layout
        "w1": w1, "b1": b1, "w2": w2, "b2": b2,
        "w3": w3_col.T,            # [1, 64] row (VPU mult + lane reduce)
        "b3": b3,                  # [1, 1]
        # batch-in-lanes layout (pre-transposed once, free at call time)
        "w1t": w1.T,               # [64, 4]
        "b1t": b1.T,               # [64, 1]
        "w2t": w2.T,               # [64, 64]
        "b2t": b2.T,               # [64, 1]
        "w3t": w3_col,             # [64, 1] column (sublane reduce)
    }


def _reference(state, setpoint, params):
    """Pure-JAX reference for correctness checks."""
    x = jnp.concatenate([state, setpoint], axis=-1)
    h1 = jnp.maximum(x @ params["w1"] + params["b1"], 0.0)
    h2 = jnp.maximum(h1 @ params["w2"] + params["b2"], 0.0)
    return jnp.tanh(h2 @ params["w3t"] + params["b3"]) * 500000.0


# ----------------------------------------------------------------------------
# Self-test
# ----------------------------------------------------------------------------
if __name__ == "__main__":
    key = jax.random.PRNGKey(0)
    k_params, k_state, k_set = jax.random.split(key, 3)
    params = init_params(k_params)

    # Small-batch path (typical controller invocation, B=8).
    B = 8
    state = jax.random.normal(k_state, (B, 3), jnp.float32)   # (err, int, deriv)
    setpoint = jax.random.normal(k_set, (B, 1), jnp.float32)  # target value
    out = jax.block_until_ready(q_controller_forward(state, setpoint, params))
    ref = _reference(state, setpoint, params)
    assert out.shape == (B, 1)
    # Output scale is 5e5 -> a few units of absolute slack for differing (f32)
    # reduction orders.
    assert jnp.allclose(out, ref, rtol=1e-4, atol=5.0), (out, ref)

    # Lane-dense large-batch path (batch-in-lanes, 2-point "parallel" grid).
    B2 = 256
    state2 = jax.random.normal(k_state, (B2, 3), jnp.float32)
    setpoint2 = jax.random.normal(k_set, (B2, 1), jnp.float32)
    out2 = jax.block_until_ready(q_controller_forward(state2, setpoint2, params))
    ref2 = _reference(state2, setpoint2, params)
    assert out2.shape == (B2, 1)
    assert jnp.allclose(out2, ref2, rtol=1e-4, atol=5.0), (out2, ref2)

    print("KERNEL_OK")
</pallas_src>

<mosaic_0001>
module attributes {stable_mosaic.version = 11 : i64} {
  func.func @_q_kernel_rows(%arg0: i32, %arg1: memref<8x4xf32, #tpu.memory_space<vmem>>, %arg2: memref<4x64xf32, #tpu.memory_space<vmem>>, %arg3: memref<1x64xf32, #tpu.memory_space<vmem>>, %arg4: memref<64x64xf32, #tpu.memory_space<vmem>>, %arg5: memref<1x64xf32, #tpu.memory_space<vmem>>, %arg6: memref<1x64xf32, #tpu.memory_space<vmem>>, %arg7: memref<1x1xf32, #tpu.memory_space<vmem>>, %arg8: memref<8x1xf32, #tpu.memory_space<vmem>>) attributes {dimension_semantics = [#tpu.dimension_semantics<arbitrary>], iteration_bounds = array<i64: 1>, scalar_prefetch = 0 : i64, scratch_operands = 0 : i64, tpu.core_type = #tpu.core_type<tc>, window_params = [{pipeline_mode = #tpu.pipeline_mode<synchronous>, transform_indices = @transform_0, window_bounds = array<i64: 8, 4>}, {pipeline_mode = #tpu.pipeline_mode<synchronous>, transform_indices = @transform_1, window_bounds = array<i64: 4, 64>}, {pipeline_mode = #tpu.pipeline_mode<synchronous>, transform_indices = @transform_2, window_bounds = array<i64: 1, 64>}, {pipeline_mode = #tpu.pipeline_mode<synchronous>, transform_indices = @transform_3, window_bounds = array<i64: 64, 64>}, {pipeline_mode = #tpu.pipeline_mode<synchronous>, transform_indices = @transform_4, window_bounds = array<i64: 1, 64>}, {pipeline_mode = #tpu.pipeline_mode<synchronous>, transform_indices = @transform_5, window_bounds = array<i64: 1, 64>}, {pipeline_mode = #tpu.pipeline_mode<synchronous>, transform_indices = @transform_6, window_bounds = array<i64: 1, 1>}, {pipeline_mode = #tpu.pipeline_mode<synchronous>, transform_indices = @transform_7, window_bounds = array<i64: 8, 1>}]} {
    %c0 = arith.constant 0 : index
    %c0_0 = arith.constant 0 : index
    %0 = vector.load %arg1[%c0, %c0_0] : memref<8x4xf32, #tpu.memory_space<vmem>>, vector<8x4xf32>
    %c0_1 = arith.constant 0 : index
    %c0_2 = arith.constant 0 : index
    %1 = vector.load %arg2[%c0_1, %c0_2] : memref<4x64xf32, #tpu.memory_space<vmem>>, vector<4x64xf32>
    %cst = arith.constant dense<0.000000e+00> : vector<8x64xf32>
    %2 = tpu.matmul %0, %1, %cst {dimension_numbers = #tpu.dot_dimension_numbers<[1], [0], [0], [1], [0, 0, 1, 1], [], []>} : vector<8x4xf32>, vector<4x64xf32>, vector<8x64xf32> -> vector<8x64xf32>
    %c0_3 = arith.constant 0 : index
    %c0_4 = arith.constant 0 : index
    %3 = vector.load %arg3[%c0_3, %c0_4] : memref<1x64xf32, #tpu.memory_space<vmem>>, vector<1x64xf32>
    %4 = vector.broadcast %3 : vector<1x64xf32> to vector<8x64xf32>
    %5 = arith.addf %2, %4 : vector<8x64xf32>
    %cst_5 = arith.constant 0.000000e+00 : f32
    %6 = vector.broadcast %cst_5 : f32 to vector<8x64xf32>
    %7 = arith.maximumf %5, %6 : vector<8x64xf32>
    %c0_6 = arith.constant 0 : index
    %c0_7 = arith.constant 0 : index
    %8 = vector.load %arg4[%c0_6, %c0_7] : memref<64x64xf32, #tpu.memory_space<vmem>>, vector<64x64xf32>
    %cst_8 = arith.constant dense<0.000000e+00> : vector<8x64xf32>
    %9 = tpu.matmul %7, %8, %cst_8 {dimension_numbers = #tpu.dot_dimension_numbers<[1], [0], [0], [1], [0, 0, 1, 1], [], []>} : vector<8x64xf32>, vector<64x64xf32>, vector<8x64xf32> -> vector<8x64xf32>
    %c0_9 = arith.constant 0 : index
    %c0_10 = arith.constant 0 : index
    %10 = vector.load %arg5[%c0_9, %c0_10] : memref<1x64xf32, #tpu.memory_space<vmem>>, vector<1x64xf32>
    %11 = vector.broadcast %10 : vector<1x64xf32> to vector<8x64xf32>
    %12 = arith.addf %9, %11 : vector<8x64xf32>
    %cst_11 = arith.constant 0.000000e+00 : f32
    %13 = vector.broadcast %cst_11 : f32 to vector<8x64xf32>
    %14 = arith.maximumf %12, %13 : vector<8x64xf32>
    %c0_12 = arith.constant 0 : index
    %c0_13 = arith.constant 0 : index
    %15 = vector.load %arg6[%c0_12, %c0_13] : memref<1x64xf32, #tpu.memory_space<vmem>>, vector<1x64xf32>
    %16 = vector.broadcast %15 : vector<1x64xf32> to vector<8x64xf32>
    %17 = arith.mulf %14, %16 : vector<8x64xf32>
    %cst_14 = arith.constant dense<0.000000e+00> : vector<8xf32>
    %18 = vector.multi_reduction <add>, %17, %cst_14 [1] : vector<8x64xf32> to vector<8xf32>
    %19 = vector.shape_cast %18 : vector<8xf32> to vector<8x1xf32>
    %c0_15 = arith.constant 0 : index
    %c0_16 = arith.constant 0 : index
    %20 = vector.load %arg7[%c0_15, %c0_16] : memref<1x1xf32, #tpu.memory_space<vmem>>, vector<1x1xf32>
    %21 = vector.broadcast %20 : vector<1x1xf32> to vector<8x1xf32>
    %22 = arith.addf %19, %21 : vector<8x1xf32>
    %23 = math.tanh %22 : vector<8x1xf32>
    %cst_17 = arith.constant 5.000000e+05 : f32
    %24 = vector.broadcast %cst_17 : f32 to vector<8x1xf32>
    %25 = arith.mulf %23, %24 : vector<8x1xf32>
    %c0_18 = arith.constant 0 : index
    %c0_19 = arith.constant 0 : index
    %26 = vector.load %arg8[%c0_18, %c0_19] : memref<8x1xf32, #tpu.memory_space<vmem>>, vector<8x1xf32>
    tpu.vector_store %arg8[%c0_18, %c0_19], %25 {strides = array<i32>} : memref<8x1xf32, #tpu.memory_space<vmem>>, vector<8x1xf32>,
    return
  }
  func.func @transform_0(%arg0: i32) -> (i32, i32) {
    %c0_i32 = arith.constant 0 : i32
    %c0_i32_0 = arith.constant 0 : i32
    %c0_i32_1 = arith.constant 0 : i32
    return %c0_i32, %c0_i32_0 : i32, i32
  }
  func.func @transform_1(%arg0: i32) -> (i32, i32) {
    %c0_i32 = arith.constant 0 : i32
    %c0_i32_0 = arith.constant 0 : i32
    %c0_i32_1 = arith.constant 0 : i32
    return %c0_i32, %c0_i32_0 : i32, i32
  }
  func.func @transform_2(%arg0: i32) -> (i32, i32) {
    %c0_i32 = arith.constant 0 : i32
    %c0_i32_0 = arith.constant 0 : i32
    %c0_i32_1 = arith.constant 0 : i32
    return %c0_i32, %c0_i32_0 : i32, i32
  }
  func.func @transform_3(%arg0: i32) -> (i32, i32) {
    %c0_i32 = arith.constant 0 : i32
    %c0_i32_0 = arith.constant 0 : i32
    %c0_i32_1 = arith.constant 0 : i32
    return %c0_i32, %c0_i32_0 : i32, i32
  }
  func.func @transform_4(%arg0: i32) -> (i32, i32) {
    %c0_i32 = arith.constant 0 : i32
    %c0_i32_0 = arith.constant 0 : i32
    %c0_i32_1 = arith.constant 0 : i32
    return %c0_i32, %c0_i32_0 : i32, i32
  }
  func.func @transform_5(%arg0: i32) -> (i32, i32) {
    %c0_i32 = arith.constant 0 : i32
    %c0_i32_0 = arith.constant 0 : i32
    %c0_i32_1 = arith.constant 0 : i32
    return %c0_i32, %c0_i32_0 : i32, i32
  }
  func.func @transform_6(%arg0: i32) -> (i32, i32) {
    %c0_i32 = arith.constant 0 : i32
    %c0_i32_0 = arith.constant 0 : i32
    %c0_i32_1 = arith.constant 0 : i32
    return %c0_i32, %c0_i32_0 : i32, i32
  }
  func.func @transform_7(%arg0: i32) -> (i32, i32) {
    %c0_i32 = arith.constant 0 : i32
    %c0_i32_0 = arith.constant 0 : i32
    %c0_i32_1 = arith.constant 0 : i32
    return %c0_i32, %c0_i32_0 : i32, i32
  }
}

</mosaic_0001>

<llo_original>
// kernel: tpu_custom_call.1
$region0: #{tpu_custom_call.1}
  #allocation0 [shape = 'u32[]', space=smem, size = 0x4, offset = 0x4, fixed_abs, tag = 'smem constant byte address 0x4 - core index']
  #allocation1 [shape = 'u32[144,128]{1,0:T(1,128)}', space=vmem, size = 0x12000, scoped, tag = 'internal scratch']
  #allocation2 [shape = 'f32[1,1]{1,0:T(1,128)S(1)}', space=vmem, size = 0x200, scoped, tag = 'scoped memory for tpu_custom_call.1']
  %s0 = inlined_call_operand.vmem [shape: f32[8,4], index: 0, kind: input, shape index: {}]
  %s1 = inlined_call_operand.vmem [shape: f32[4,64], index: 1, kind: input, shape index: {}]
  %s2 = inlined_call_operand.vmem [shape: f32[1,64], index: 2, kind: input, shape index: {}]
  %s3 = inlined_call_operand.hbm [shape: f32[64,64], index: 3, kind: input, shape index: {}]
  %s4 = inlined_call_operand.vmem [shape: f32[1,64], index: 4, kind: input, shape index: {}]
  %s5 = inlined_call_operand.vmem [shape: f32[1,64], index: 5, kind: input, shape index: {}]
  %s6 = inlined_call_operand.<no memory space> [shape: f32[1,1], index: 6, kind: input, shape index: {}]
  %s7 = inlined_call_operand.vmem [shape: f32[8,1], index: 7, kind: output, shape index: {}]
  %s8 = sld [smem:[#allocation0]]
  $region42: #{tpu_custom_call.1} parent=0
    _
  %s10 = ssub.s32 1, %s8
  %s11 = scalar_select 0, %s10, %s8
  %v12 = vstv %s6
  %13 = vst [vmem:[#allocation2] sm:$0x1] %v12
  $region1: #{tpu_custom_call.1} parent=0
    #allocation3 [shape = 'u8[32768]{0}', space=vmem, size = 0x8000, scoped, tag = 'input window, operand 3, single buffered']
    #allocation4 [shape = 's32[1]{0}', space=sflag, size = 0x4, scoped, tag = 'scoped memory for tpu_custom_call.1']
    %14 = vsyncpa [#allocation4], 0
    // Predicated region
    $region2: #{tpu_custom_call.1} parent=1 // pred_check
      _
    $region3: #{tpu_custom_call.1} parent=1 // pred_check_branch
      %16 = sbr.rel (0) target = $region5
    $region4: #{tpu_custom_call.1} parent=1 // pred_region
      _
    $region5: #{tpu_custom_call.1} parent=1 // pred_fallthru
      _
    // Predicated region
    $region6: #{tpu_custom_call.1} parent=1 // pred_check
      _
    $region7: #{tpu_custom_call.1} parent=1 // pred_check_branch
      %18 = sbr.rel (0) target = $region9
    $region8: #{tpu_custom_call.1} parent=1 // pred_region
      _
    $region9: #{tpu_custom_call.1} parent=1 // pred_fallthru
      _
    // Predicated region
    $region10: #{tpu_custom_call.1} parent=1 // pred_check
      _
    $region11: #{tpu_custom_call.1} parent=1 // pred_check_branch
      %20 = sbr.rel (0) target = $region13
    $region12: #{tpu_custom_call.1} parent=1 // pred_region
      _
    $region13: #{tpu_custom_call.1} parent=1 // pred_fallthru
      _
    // Predicated region
    $region14: #{tpu_custom_call.1} parent=1 // pred_check
      _
    $region15: #{tpu_custom_call.1} parent=1 // pred_check_branch
      %22 = sbr.rel (0) target = $region17
    $region16: #{tpu_custom_call.1} parent=1 // pred_region
      %s24 = ssub.s32 1024, 1024
      %25 = vsyncadd [#allocation4], %s24
      %s26 = sshll.u32 [#allocation3], 4
      %s27 = int_to_ptr.vmem [resolvable:$true] %s26
      %32 = dma.hbm_to_vmem [thread:$0]  %s3, 1024, %s27, [#allocation4], 128, 128, 8
    $region17: #{tpu_custom_call.1} parent=1 // pred_fallthru
      _
    // Predicated region
    $region18: #{tpu_custom_call.1} parent=1 // pred_check
      _
    $region19: #{tpu_custom_call.1} parent=1 // pred_check_branch
      %34 = sbr.rel (0) target = $region21
    $region20: #{tpu_custom_call.1} parent=1 // pred_region
      _
    $region21: #{tpu_custom_call.1} parent=1 // pred_fallthru
      _
    // Predicated region
    $region22: #{tpu_custom_call.1} parent=1 // pred_check
      _
    $region23: #{tpu_custom_call.1} parent=1 // pred_check_branch
      %36 = sbr.rel (0) target = $region25
    $region24: #{tpu_custom_call.1} parent=1 // pred_region
      _
    $region25: #{tpu_custom_call.1} parent=1 // pred_fallthru
      _
    // Predicated region
    $region26: #{tpu_custom_call.1} parent=1 // pred_check
      _
    $region27: #{tpu_custom_call.1} parent=1 // pred_check_branch
      %38 = sbr.rel (0) target = $region29
    $region28: #{tpu_custom_call.1} parent=1 // pred_region
      _
    $region29: #{tpu_custom_call.1} parent=1 // pred_fallthru
      _
    // Predicated region
    $region30: #{tpu_custom_call.1} parent=1 // pred_check
      _
    $region31: #{tpu_custom_call.1} parent=1 // pred_check_branch
      %40 = sbr.rel (0) target = $region33
    $region32: #{tpu_custom_call.1} parent=1 // pred_region
      %41 = dma.done [#allocation4], 1024
    $region33: #{tpu_custom_call.1} parent=1 // pred_fallthru
      _
    %v42 = vld [vmem:[%s0] sm:$0xff]
    %v43 = vld [vmem:[%s1] sm:$0xf]
    %v44 = vld [vmem:[%s2] sm:$0x1]
    %v46 = vlaneseq
    %v47 = vshrl.u32 %v46, 7
    %v48 = vsub.s32 0, %v47
    %v49 = vrot.slane %v44, %v48
    %vm51 = vcmask 31744
    %v53 = vsel %vm51, %v42, 0
    %vm55 = vcmask 1043456
    %v57 = vsel %vm55, %v43, 0
    %59 = vmatprep.subr.mxu0 0.0
    %60 = vmatpush1.msra.mxu0 %v57
    %61 = vmatprep.subr.mxu0 0.0
    %62 = vmatpush1.msra.mxu0 0.0
    %63 = vmatprep.subr.mxu0 0.0
    %64 = vmatpush1.msra.mxu0 0.0
    %65 = vmatprep.subr.mxu0 0.0
    %66 = vmatpush1.msra.mxu0 0.0
    %67 = vmatprep.subr.mxu0 0.0
    %68 = vmatpush1.msra.mxu0 0.0
    %69 = vmatprep.subr.mxu0 0.0
    %70 = vmatpush1.msra.mxu0 0.0
    %71 = vmatprep.subr.mxu0 0.0
    %72 = vmatpush1.msra.mxu0 0.0
    %73 = vmatprep.subr.mxu0 0.0
    %74 = vmatpush1.msra.mxu0 0.0
    %75 = vmatprep.subr.mxu0 0.0
    %76 = vmatpush1.msra.mxu0 0.0
    %77 = vmatprep.subr.mxu0 0.0
    %78 = vmatpush1.msra.mxu0 0.0
    %79 = vmatprep.subr.mxu0 0.0
    %80 = vmatpush1.msra.mxu0 0.0
    %81 = vmatprep.subr.mxu0 0.0
    %82 = vmatpush1.msra.mxu0 0.0
    %83 = vmatprep.subr.mxu0 0.0
    %84 = vmatpush1.msra.mxu0 0.0
    %85 = vmatprep.subr.mxu0 0.0
    %86 = vmatpush1.msra.mxu0 0.0
    %87 = vmatprep.subr.mxu0 0.0
    %88 = vmatpush1.msra.mxu0 0.0
    %89 = vmatprep.subr.mxu0 0.0
    %90 = vmatpush1.msra.mxu0 0.0
    %91 = vmatprep.subr.mxu0 0.0
    %92 = vmatpush1.msra.mxu0 0.0
    %93 = vmatprep.subr.mxu0 0.0
    %94 = vmatpush1.msra.mxu0 0.0
    %95 = vmatprep.subr.mxu0 0.0
    %96 = vmatpush1.msra.mxu0 0.0
    %97 = vmatprep.subr.mxu0 0.0
    %98 = vmatpush1.msra.mxu0 0.0
    %99 = vmatprep.subr.mxu0 0.0
    %100 = vmatpush1.msra.mxu0 0.0
    %101 = vmatprep.subr.mxu0 0.0
    %102 = vmatpush1.msra.mxu0 0.0
    %103 = vmatprep.subr.mxu0 0.0
    %104 = vmatpush1.msra.mxu0 0.0
    %105 = vmatprep.subr.mxu0 0.0
    %106 = vmatpush1.msra.mxu0 0.0
    %107 = vmatprep.subr.mxu0 0.0
    %108 = vmatpush1.msra.mxu0 0.0
    %109 = vmatprep.subr.mxu0 0.0
    %110 = vmatpush1.msra.mxu0 0.0
    %111 = vmatprep.subr.mxu0 0.0
    %112 = vmatpush1.msra.mxu0 0.0
    %113 = vmatprep.subr.mxu0 0.0
    %114 = vmatpush1.msra.mxu0 0.0
    %115 = vmatprep.subr.mxu0 0.0
    %116 = vmatpush1.msra.mxu0 0.0
    %117 = vmatprep.subr.mxu0 0.0
    %118 = vmatpush1.msra.mxu0 0.0
    %119 = vmatprep.subr.mxu0 0.0
    %120 = vmatpush1.msra.mxu0 0.0
    %121 = vmatprep.subr.mxu0 0.0
    %122 = vmatpush1.msra.mxu0 0.0
    %123 = vmatprep.mubr.f32.mxu0 0.0
    %124 = vmatmul.mubr.f32.gmra.mrb[0].mxu0 %v53
    %v125 = vpop.f32.mrb[0].mxu0
    %v126 = vadd.f32 %v49, %v125
    %v127 = vpop.f32.mrb[0].mxu0
    %128 = vdwg.mxu0
    %v129 = vmax.f32 %v126, 0.0
    %v130 = vld [vmem:[#allocation3] sm:$0xff]
    %v131 = vld [vmem:[#allocation3 + $0x8] sm:$0xff]
    %v132 = vld [vmem:[#allocation3 + $0x10] sm:$0xff]
    %v133 = vld [vmem:[#allocation3 + $0x18] sm:$0xff]
    %v134 = vld [vmem:[#allocation3 + $0x20] sm:$0xff]
    %v135 = vld [vmem:[#allocation3 + $0x28] sm:$0xff]
    %v136 = vld [vmem:[#allocation3 + $0x30] sm:$0xff]
    %v137 = vld [vmem:[#allocation3 + $0x38] sm:$0xff]
    %v138 = vld [vmem:[%s4] sm:$0x1]
    %v140 = vlaneseq
    %v141 = vshrl.u32 %v140, 7
    %v142 = vsub.s32 0, %v141
    %v143 = vrot.slane %v138, %v142
    %vm145 = vcmask 523264
    %v147 = vsel %vm145, %v129, 0
    %149 = vmatprep.subr.mxu0 0.0
    %150 = vmatpush1.msra.mxu0 %v130
    %151 = vmatprep.subr.mxu0 0.0
    %152 = vmatpush1.msra.mxu0 %v131
    %153 = vmatprep.subr.mxu0 0.0
    %154 = vmatpush1.msra.mxu0 %v132
    %155 = vmatprep.subr.mxu0 0.0
    %156 = vmatpush1.msra.mxu0 %v133
    %157 = vmatprep.subr.mxu0 0.0
    %158 = vmatpush1.msra.mxu0 %v134
    %159 = vmatprep.subr.mxu0 0.0
    %160 = vmatpush1.msra.mxu0 %v135
    %161 = vmatprep.subr.mxu0 0.0
    %162 = vmatpush1.msra.mxu0 %v136
    %163 = vmatprep.subr.mxu0 0.0
    %164 = vmatpush1.msra.mxu0 %v137
    %165 = vmatprep.subr.mxu0 0.0
    %166 = vmatpush1.msra.mxu0 0.0
    %167 = vmatprep.subr.mxu0 0.0
    %168 = vmatpush1.msra.mxu0 0.0
    %169 = vmatprep.subr.mxu0 0.0
    %170 = vmatpush1.msra.mxu0 0.0
    %171 = vmatprep.subr.mxu0 0.0
    %172 = vmatpush1.msra.mxu0 0.0
    %173 = vmatprep.subr.mxu0 0.0
    %174 = vmatpush1.msra.mxu0 0.0
    %175 = vmatprep.subr.mxu0 0.0
    %176 = vmatpush1.msra.mxu0 0.0
    %177 = vmatprep.subr.mxu0 0.0
    %178 = vmatpush1.msra.mxu0 0.0
    %179 = vmatprep.subr.mxu0 0.0
    %180 = vmatpush1.msra.mxu0 0.0
    %181 = vmatprep.subr.mxu0 0.0
    %182 = vmatpush1.msra.mxu0 0.0
    %183 = vmatprep.subr.mxu0 0.0
    %184 = vmatpush1.msra.mxu0 0.0
    %185 = vmatprep.subr.mxu0 0.0
    %186 = vmatpush1.msra.mxu0 0.0
    %187 = vmatprep.subr.mxu0 0.0
    %188 = vmatpush1.msra.mxu0 0.0
    %189 = vmatprep.subr.mxu0 0.0
    %190 = vmatpush1.msra.mxu0 0.0
    %191 = vmatprep.subr.mxu0 0.0
    %192 = vmatpush1.msra.mxu0 0.0
    %193 = vmatprep.subr.mxu0 0.0
    %194 = vmatpush1.msra.mxu0 0.0
    %195 = vmatprep.subr.mxu0 0.0
    %196 = vmatpush1.msra.mxu0 0.0
    %197 = vmatprep.subr.mxu0 0.0
    %198 = vmatpush1.msra.mxu0 0.0
    %199 = vmatprep.subr.mxu0 0.0
    %200 = vmatpush1.msra.mxu0 0.0
    %201 = vmatprep.subr.mxu0 0.0
    %202 = vmatpush1.msra.mxu0 0.0
    %203 = vmatprep.subr.mxu0 0.0
    %204 = vmatpush1.msra.mxu0 0.0
    %205 = vmatprep.subr.mxu0 0.0
    %206 = vmatpush1.msra.mxu0 0.0
    %207 = vmatprep.subr.mxu0 0.0
    %208 = vmatpush1.msra.mxu0 0.0
    %209 = vmatprep.subr.mxu0 0.0
    %210 = vmatpush1.msra.mxu0 0.0
    %211 = vmatprep.subr.mxu0 0.0
    %212 = vmatpush1.msra.mxu0 0.0
    %213 = vmatprep.mubr.f32.mxu0 0.0
    %214 = vmatmul.mubr.f32.gmra.mrb[0].mxu0 %v147
    %v215 = vpop.f32.mrb[0].mxu0
    %v216 = vadd.f32 %v143, %v215
    %v217 = vpop.f32.mrb[0].mxu0
    %218 = vdwg.mxu0
    %v219 = vmax.f32 %v216, 0.0
    %v220 = vld [vmem:[%s5] sm:$0x1]
    %v222 = vlaneseq
    %v223 = vshrl.u32 %v222, 7
    %v224 = vsub.s32 0, %v223
    %v225 = vrot.slane %v220, %v224
    %v227 = vmul.f32 %v219, %v225
    %v228 = vsel %vm145, %v227, 0.0
    %229 = vadd.xlane.f32.xlu0 %v228
    %v230 = vpop.xlane.xlu0 %229
    %v231 = vld [vmem:[#allocation2] sm:$0x1]
    %v233 = vlaneseq
    %v234 = vshrl.u32 %v233, 7
    %v235 = vsub.s32 0, %v234
    %v236 = vrot.slane %v231, %v235
    %v238 = vadd.f32 %v230, %v236
    %v239 = vtanh.pop %v238
    %v240 = vmul.f32 %v239, 500000.0
    %vm241 = vcmask 7168
    %242 = vst.msk [vmem:[%s7] sm:$0xff] %vm241, %v240
    // Predicated region
    $region34: #{tpu_custom_call.1} parent=1 // pred_check
      _
    $region35: #{tpu_custom_call.1} parent=1 // pred_check_branch
      %244 = sbr.rel (0) target = $region37
    $region36: #{tpu_custom_call.1} parent=1 // pred_region
      _
    $region37: #{tpu_custom_call.1} parent=1 // pred_fallthru
      _
    // Predicated region
    $region38: #{tpu_custom_call.1} parent=1 // pred_check
      _
    $region39: #{tpu_custom_call.1} parent=1 // pred_check_branch
      %246 = sbr.rel (0) target = $region41
    $region40: #{tpu_custom_call.1} parent=1 // pred_region
      _
    $region41: #{tpu_custom_call.1} parent=1 // pred_fallthru
      _
    %247 = vsyncpa [#allocation4], 1

</llo_original>
